<compile_context>
chip_gen: v7x
topology: tpu7x:2x2x1
jax: 0.10.0
libtpu: 0.0.40
codegen_flags: <defaults>
</compile_context>

<pallas_src>
import functools

import jax
import jax.numpy as jnp
from jax.experimental import pallas as pl
from jax.experimental.pallas import tpu as pltpu


# ---------------------------------------------------------------------------
# Fused Pallas kernel: whole forward pass in one call
# ---------------------------------------------------------------------------

def _gcnnet_fused_kernel(a_ref, x_ref, w1_ref, w2cat_ref, w3cat_ref,
                         f1c_ref, p_ref, fw3_ref, bias_ref, o_ref):
    f32 = jnp.float32
    bf16 = jnp.bfloat16

    d = w1_ref.shape[1]          # conv hidden dim
    gdim = f1c_ref.shape[1]      # fc1 output dim
    c = o_ref.shape[1]           # num classes

    # A_norm loaded once, reused for all three conv layers (stays vreg/VMEM-resident).
    a = a_ref[...]                                      # [N, N] bf16

    # Packed biases, loaded once; static row slices (lane offset 0 => aligned).
    bias = bias_ref[...]                                # [8, LW] f32
    b1 = bias[0:1, :d]
    b2 = bias[1:2, :d]
    b3 = bias[2:3, :d]
    fb1 = bias[3:4, :gdim]
    fb3 = bias[4:5, :c]

    # ---- conv1: relu((A @ X) @ W1 + b1) --------------------------------------
    # F_IN < DIM, so contract the feature dim first (fewer MXU pushes).
    ax = jnp.dot(a, x_ref[...], preferred_element_type=f32)          # [N, F] f32
    x1 = jnp.dot(ax.astype(bf16), w1_ref[...],
                 preferred_element_type=f32) + b1                    # [N, D] f32
    x1 = jnp.maximum(x1, 0.0)
    x1b = x1.astype(bf16)

    # ---- conv2 + fc1(part a): one wide MXU pass x1 @ [f1a | W2] --------------
    r2 = jnp.dot(x1b, w2cat_ref[...], preferred_element_type=f32)    # [N, GDIM+D]
    h_acc = r2[:, :gdim]                                             # x1 @ fc1_a
    xw2 = r2[:, gdim:]                                               # x1 @ W2
    x2 = jnp.dot(a, xw2.astype(bf16), preferred_element_type=f32) + b2
    x2b = x2.astype(bf16)

    # ---- conv3 + fc1(part b): one wide MXU pass x2 @ [f1b | W3] --------------
    r3 = jnp.dot(x2b, w3cat_ref[...], preferred_element_type=f32)    # [N, GDIM+D]
    h_acc = h_acc + r3[:, :gdim]                                     # + x2 @ fc1_b
    xw3 = r3[:, gdim:]                                               # x2 @ W3
    x3 = jnp.dot(a, xw3.astype(bf16), preferred_element_type=f32) + b3
    x3b = x3.astype(bf16)

    # ---- fc1(part c) + bias + ReLU (implicit concat, never materialized) -----
    h = h_acc + jnp.dot(x3b, f1c_ref[...], preferred_element_type=f32) + fb1
    h = jnp.maximum(h, 0.0)                                          # [N, GDIM]

    # ---- global_add_pool (P @ h) -> fc3 -> log_softmax ------------------------
    g = jnp.dot(p_ref[...], h.astype(bf16), preferred_element_type=f32)   # [G, GDIM]
    logits = jnp.dot(g.astype(bf16), fw3_ref[...],
                     preferred_element_type=f32) + fb3               # [G, C] f32
    m = jnp.max(logits, axis=-1, keepdims=True)
    s = logits - m
    lse = jnp.log(jnp.sum(jnp.exp(s), axis=-1, keepdims=True))
    o_ref[...] = (s - lse).astype(o_ref.dtype)


# ---------------------------------------------------------------------------
# Graph densification helpers (fused under the same jit as the forward pass)
# ---------------------------------------------------------------------------

def build_norm_adj(edge_index, num_nodes):
    """Dense improved-GCN normalized adjacency: D^-1/2 (A + 2I) D^-1/2.

    Built with a one-hot matmul instead of an XLA scatter (MXU-friendly,
    fuses; the scatter was the most expensive op in the jitted forward).
    NOTE: duplicate edges in edge_index get weight > 1 (same as the original
    scatter-based build); dedup upstream for real multigraph edge lists.
    """
    src, dst = edge_index[0], edge_index[1]
    nodes = jnp.arange(num_nodes, dtype=src.dtype)
    src_oh = (src[:, None] == nodes[None, :]).astype(jnp.float32)   # [E, N]
    dst_oh = (dst[:, None] == nodes[None, :]).astype(jnp.float32)   # [E, N]
    a = jnp.dot(src_oh.T, dst_oh, preferred_element_type=jnp.float32)  # [N, N]
    a = a + 2.0 * jnp.eye(num_nodes, dtype=jnp.float32)  # improved=True self loops
    deg = jnp.sum(a, axis=1)
    dinv = jnp.where(deg > 0, 1.0 / jnp.sqrt(deg), 0.0)
    return a * dinv[:, None] * dinv[None, :]


def build_pool_matrix(batch, num_graphs):
    """One-hot [G, N] matrix so that P @ X == global_add_pool(X, batch)."""
    return (batch[None, :] == jnp.arange(num_graphs)[:, None]).astype(jnp.float32)


# ---------------------------------------------------------------------------
# Parameter init (parity with the PyTorch module, incl. unused fc1a / fc2)
# ---------------------------------------------------------------------------

def init_params(key, num_features, dim, gdim, pretr_out_dim, num_classes):
    ks = jax.random.split(key, 14)

    def lin(kw, kb, fan_in, fan_out):
        bound = 1.0 / jnp.sqrt(jnp.float32(fan_in))
        w = jax.random.uniform(kw, (fan_in, fan_out), jnp.float32, -bound, bound)
        b = jax.random.uniform(kb, (1, fan_out), jnp.float32, -bound, bound)
        return w, b

    p = {}
    p["conv1_w"], p["conv1_b"] = lin(ks[0], ks[1], num_features, dim)
    p["conv2_w"], p["conv2_b"] = lin(ks[2], ks[3], dim, dim)
    p["conv3_w"], p["conv3_b"] = lin(ks[4], ks[5], dim, dim)
    p["fc1_w"], p["fc1_b"] = lin(ks[6], ks[7], 3 * dim, gdim)
    p["fc1a_w"], p["fc1a_b"] = lin(ks[8], ks[9], gdim, gdim)            # pretr only
    p["fc2_w"], p["fc2_b"] = lin(ks[10], ks[11], gdim, pretr_out_dim)   # pretr only
    p["fc3_w"], p["fc3_b"] = lin(ks[12], ks[13], gdim, num_classes)
    return p


# ---------------------------------------------------------------------------
# Forward: one fused pallas_call, everything whole-array in VMEM
# ---------------------------------------------------------------------------

_VMEM_SPEC = pl.BlockSpec(memory_space=pltpu.MemorySpace.VMEM)


@functools.partial(jax.jit, static_argnames=("num_graphs",))
def gcnnet_forward(params, x, edge_index, batch, num_graphs):
    n, f_in = x.shape
    dim = params["conv2_w"].shape[0]
    gdim = params["fc1_w"].shape[1]
    n_classes = params["fc3_w"].shape[1]
    bf16 = jnp.bfloat16

    # Graph structure -> dense operators (fused in the same jit: no extra dispatch).
    a_norm = build_norm_adj(edge_index, n).astype(bf16)           # [N, N]
    pool_mat = build_pool_matrix(batch, num_graphs).astype(bf16)  # [G, N] (0/1 exact)

    # bf16 MXU operands.
    x_bf = x.astype(bf16)
    w1 = params["conv1_w"].astype(bf16)
    f1 = params["fc1_w"]
    # Widened RHS matrices: [fc1_a | W2] and [fc1_b | W3]. GDIM-first ordering
    # keeps the in-kernel result slices vreg-aligned (offset 0 / offset GDIM).
    w2cat = jnp.concatenate([f1[:dim], params["conv2_w"]], axis=1).astype(bf16)
    w3cat = jnp.concatenate([f1[dim:2 * dim], params["conv3_w"]], axis=1).astype(bf16)
    f1c = f1[2 * dim:].astype(bf16)
    fw3 = params["fc3_w"].astype(bf16)

    # All six tiny f32 biases packed into ONE operand (one DMA instead of five),
    # one bias per sublane row so in-kernel slices start at lane 0.
    lane_w = -(-max(dim, gdim, n_classes, 128) // 128) * 128
    bias_pack = jnp.zeros((8, lane_w), jnp.float32)
    bias_pack = bias_pack.at[0, :dim].set(params["conv1_b"][0])
    bias_pack = bias_pack.at[1, :dim].set(params["conv2_b"][0])
    bias_pack = bias_pack.at[2, :dim].set(params["conv3_b"][0])
    bias_pack = bias_pack.at[3, :gdim].set(params["fc1_b"][0])
    bias_pack = bias_pack.at[4, :n_classes].set(params["fc3_b"][0])

    operands = (a_norm, x_bf, w1, w2cat, w3cat, f1c, pool_mat, fw3, bias_pack)

    # Advisory cost estimate so XLA schedules the custom call vs. the in-jit
    # adjacency/pool-matrix build sensibly.
    flops = 2 * (n * n * f_in + n * f_in * dim              # conv1
                 + n * dim * (gdim + dim) + n * n * dim     # conv2 + fc1_a
                 + n * dim * (gdim + dim) + n * n * dim     # conv3 + fc1_b
                 + n * dim * gdim                           # fc1_c
                 + num_graphs * n * gdim                    # global_add_pool
                 + num_graphs * gdim * n_classes)           # fc3
    bytes_accessed = (sum(int(op.size) * op.dtype.itemsize for op in operands)
                      + num_graphs * n_classes * 4)
    cost = pl.CostEstimate(flops=int(flops),
                           transcendentals=int(num_graphs * (n_classes + 1)),
                           bytes_accessed=int(bytes_accessed))

    return pl.pallas_call(
        _gcnnet_fused_kernel,
        out_shape=jax.ShapeDtypeStruct((num_graphs, n_classes), jnp.float32),
        in_specs=[_VMEM_SPEC] * len(operands),
        out_specs=_VMEM_SPEC,
        cost_estimate=cost,
    )(*operands)


# ---------------------------------------------------------------------------
# Main
# ---------------------------------------------------------------------------

if __name__ == "__main__":
    # Small synthetic graph batch consistent with the module:
    #   N=32 nodes, F=16 input features, dim=32, gdim=128, 2 classes, 2 graphs.
    N, F_IN, DIM, GDIM, PRETR_OUT, N_CLASSES, N_GRAPHS = 32, 16, 32, 128, 100, 2, 2

    key = jax.random.PRNGKey(0)
    k_param, k_x = jax.random.split(key)

    params = init_params(k_param, F_IN, DIM, GDIM, PRETR_OUT, N_CLASSES)

    # Node features.
    x = jax.random.normal(k_x, (N, F_IN), jnp.float32)

    # Deterministic edge_index: a ring inside each graph, both directions listed
    # (PyG convention for undirected graphs).
    half = N // N_GRAPHS
    srcs, dsts = [], []
    for g in range(N_GRAPHS):
        base = g * half
        for i in range(half):
            a_node = base + i
            b_node = base + (i + 1) % half
            srcs += [a_node, b_node]
            dsts += [b_node, a_node]
    edge_index = jnp.array([srcs, dsts], dtype=jnp.int32)  # [2, E]

    # batch assignment: first half -> graph 0, second half -> graph 1.
    batch = jnp.repeat(jnp.arange(N_GRAPHS, dtype=jnp.int32), half)

    out = gcnnet_forward(params, x, edge_index, batch, N_GRAPHS)
    out = jax.block_until_ready(out)

    assert out.shape == (N_GRAPHS, N_CLASSES), out.shape
    assert bool(jnp.all(jnp.isfinite(out)))
    # log_softmax rows must (log-)sum to 1.
    assert bool(jnp.allclose(jnp.sum(jnp.exp(out), axis=-1), 1.0, atol=1e-3))

    print("KERNEL_OK")
</pallas_src>

<mosaic_0001>
module attributes {stable_mosaic.version = 11 : i64} {
  func.func @_gcnnet_fused_kernel(%arg0: memref<32x32xbf16, #tpu.memory_space<vmem>>, %arg1: memref<32x16xbf16, #tpu.memory_space<vmem>>, %arg2: memref<16x32xbf16, #tpu.memory_space<vmem>>, %arg3: memref<32x160xbf16, #tpu.memory_space<vmem>>, %arg4: memref<32x160xbf16, #tpu.memory_space<vmem>>, %arg5: memref<32x128xbf16, #tpu.memory_space<vmem>>, %arg6: memref<2x32xbf16, #tpu.memory_space<vmem>>, %arg7: memref<128x2xbf16, #tpu.memory_space<vmem>>, %arg8: memref<8x128xf32, #tpu.memory_space<vmem>>, %arg9: memref<2x2xf32, #tpu.memory_space<vmem>>) attributes {dimension_semantics = [], scalar_prefetch = 0 : i64, scratch_operands = 0 : i64, tpu.core_type = #tpu.core_type<tc>} {
    %c0 = arith.constant 0 : index
    %c0_0 = arith.constant 0 : index
    %0 = vector.load %arg0[%c0, %c0_0] : memref<32x32xbf16, #tpu.memory_space<vmem>>, vector<32x32xbf16>
    %c0_1 = arith.constant 0 : index
    %c0_2 = arith.constant 0 : index
    %1 = vector.load %arg8[%c0_1, %c0_2] : memref<8x128xf32, #tpu.memory_space<vmem>>, vector<8x128xf32>
    %2 = vector.extract_strided_slice %1 {offsets = [0, 0], sizes = [1, 32], strides = [1, 1]} : vector<8x128xf32> to vector<1x32xf32>
    %3 = vector.extract_strided_slice %1 {offsets = [1, 0], sizes = [1, 32], strides = [1, 1]} : vector<8x128xf32> to vector<1x32xf32>
    %4 = vector.extract_strided_slice %1 {offsets = [2, 0], sizes = [1, 32], strides = [1, 1]} : vector<8x128xf32> to vector<1x32xf32>
    %5 = vector.extract_strided_slice %1 {offsets = [3, 0], sizes = [1, 128], strides = [1, 1]} : vector<8x128xf32> to vector<1x128xf32>
    %6 = vector.extract_strided_slice %1 {offsets = [4, 0], sizes = [1, 2], strides = [1, 1]} : vector<8x128xf32> to vector<1x2xf32>
    %c0_3 = arith.constant 0 : index
    %c0_4 = arith.constant 0 : index
    %7 = vector.load %arg1[%c0_3, %c0_4] : memref<32x16xbf16, #tpu.memory_space<vmem>>, vector<32x16xbf16>
    %cst = arith.constant dense<0.000000e+00> : vector<32x16xf32>
    %8 = tpu.matmul %0, %7, %cst {dimension_numbers = #tpu.dot_dimension_numbers<[1], [0], [0], [1], [0, 0, 1, 1], [], []>} : vector<32x32xbf16>, vector<32x16xbf16>, vector<32x16xf32> -> vector<32x16xf32>
    %9 = arith.truncf %8 : vector<32x16xf32> to vector<32x16xbf16>
    %c0_5 = arith.constant 0 : index
    %c0_6 = arith.constant 0 : index
    %10 = vector.load %arg2[%c0_5, %c0_6] : memref<16x32xbf16, #tpu.memory_space<vmem>>, vector<16x32xbf16>
    %cst_7 = arith.constant dense<0.000000e+00> : vector<32x32xf32>
    %11 = tpu.matmul %9, %10, %cst_7 {dimension_numbers = #tpu.dot_dimension_numbers<[1], [0], [0], [1], [0, 0, 1, 1], [], []>} : vector<32x16xbf16>, vector<16x32xbf16>, vector<32x32xf32> -> vector<32x32xf32>
    %12 = vector.broadcast %2 : vector<1x32xf32> to vector<32x32xf32>
    %13 = arith.addf %11, %12 : vector<32x32xf32>
    %cst_8 = arith.constant 0.000000e+00 : f32
    %14 = vector.broadcast %cst_8 : f32 to vector<32x32xf32>
    %15 = arith.maximumf %13, %14 : vector<32x32xf32>
    %16 = arith.truncf %15 : vector<32x32xf32> to vector<32x32xbf16>
    %c0_9 = arith.constant 0 : index
    %c0_10 = arith.constant 0 : index
    %17 = vector.load %arg3[%c0_9, %c0_10] : memref<32x160xbf16, #tpu.memory_space<vmem>>, vector<32x160xbf16>
    %cst_11 = arith.constant dense<0.000000e+00> : vector<32x160xf32>
    %18 = tpu.matmul %16, %17, %cst_11 {dimension_numbers = #tpu.dot_dimension_numbers<[1], [0], [0], [1], [0, 0, 1, 1], [], []>} : vector<32x32xbf16>, vector<32x160xbf16>, vector<32x160xf32> -> vector<32x160xf32>
    %19 = vector.extract_strided_slice %18 {offsets = [0, 0], sizes = [32, 128], strides = [1, 1]} : vector<32x160xf32> to vector<32x128xf32>
    %20 = vector.extract_strided_slice %18 {offsets = [0, 128], sizes = [32, 32], strides = [1, 1]} : vector<32x160xf32> to vector<32x32xf32>
    %21 = arith.truncf %20 : vector<32x32xf32> to vector<32x32xbf16>
    %cst_12 = arith.constant dense<0.000000e+00> : vector<32x32xf32>
    %22 = tpu.matmul %0, %21, %cst_12 {dimension_numbers = #tpu.dot_dimension_numbers<[1], [0], [0], [1], [0, 0, 1, 1], [], []>} : vector<32x32xbf16>, vector<32x32xbf16>, vector<32x32xf32> -> vector<32x32xf32>
    %23 = vector.broadcast %3 : vector<1x32xf32> to vector<32x32xf32>
    %24 = arith.addf %22, %23 : vector<32x32xf32>
    %25 = arith.truncf %24 : vector<32x32xf32> to vector<32x32xbf16>
    %c0_13 = arith.constant 0 : index
    %c0_14 = arith.constant 0 : index
    %26 = vector.load %arg4[%c0_13, %c0_14] : memref<32x160xbf16, #tpu.memory_space<vmem>>, vector<32x160xbf16>
    %cst_15 = arith.constant dense<0.000000e+00> : vector<32x160xf32>
    %27 = tpu.matmul %25, %26, %cst_15 {dimension_numbers = #tpu.dot_dimension_numbers<[1], [0], [0], [1], [0, 0, 1, 1], [], []>} : vector<32x32xbf16>, vector<32x160xbf16>, vector<32x160xf32> -> vector<32x160xf32>
    %28 = vector.extract_strided_slice %27 {offsets = [0, 0], sizes = [32, 128], strides = [1, 1]} : vector<32x160xf32> to vector<32x128xf32>
    %29 = arith.addf %19, %28 : vector<32x128xf32>
    %30 = vector.extract_strided_slice %27 {offsets = [0, 128], sizes = [32, 32], strides = [1, 1]} : vector<32x160xf32> to vector<32x32xf32>
    %31 = arith.truncf %30 : vector<32x32xf32> to vector<32x32xbf16>
    %cst_16 = arith.constant dense<0.000000e+00> : vector<32x32xf32>
    %32 = tpu.matmul %0, %31, %cst_16 {dimension_numbers = #tpu.dot_dimension_numbers<[1], [0], [0], [1], [0, 0, 1, 1], [], []>} : vector<32x32xbf16>, vector<32x32xbf16>, vector<32x32xf32> -> vector<32x32xf32>
    %33 = vector.broadcast %4 : vector<1x32xf32> to vector<32x32xf32>
    %34 = arith.addf %32, %33 : vector<32x32xf32>
    %35 = arith.truncf %34 : vector<32x32xf32> to vector<32x32xbf16>
    %c0_17 = arith.constant 0 : index
    %c0_18 = arith.constant 0 : index
    %36 = vector.load %arg5[%c0_17, %c0_18] : memref<32x128xbf16, #tpu.memory_space<vmem>>, vector<32x128xbf16>
    %cst_19 = arith.constant dense<0.000000e+00> : vector<32x128xf32>
    %37 = tpu.matmul %35, %36, %cst_19 {dimension_numbers = #tpu.dot_dimension_numbers<[1], [0], [0], [1], [0, 0, 1, 1], [], []>} : vector<32x32xbf16>, vector<32x128xbf16>, vector<32x128xf32> -> vector<32x128xf32>
    %38 = arith.addf %29, %37 : vector<32x128xf32>
    %39 = vector.broadcast %5 : vector<1x128xf32> to vector<32x128xf32>
    %40 = arith.addf %38, %39 : vector<32x128xf32>
    %cst_20 = arith.constant 0.000000e+00 : f32
    %41 = vector.broadcast %cst_20 : f32 to vector<32x128xf32>
    %42 = arith.maximumf %40, %41 : vector<32x128xf32>
    %c0_21 = arith.constant 0 : index
    %c0_22 = arith.constant 0 : index
    %43 = vector.load %arg6[%c0_21, %c0_22] : memref<2x32xbf16, #tpu.memory_space<vmem>>, vector<2x32xbf16>
    %44 = arith.truncf %42 : vector<32x128xf32> to vector<32x128xbf16>
    %cst_23 = arith.constant dense<0.000000e+00> : vector<2x128xf32>
    %45 = tpu.matmul %43, %44, %cst_23 {dimension_numbers = #tpu.dot_dimension_numbers<[1], [0], [0], [1], [0, 0, 1, 1], [], []>} : vector<2x32xbf16>, vector<32x128xbf16>, vector<2x128xf32> -> vector<2x128xf32>
    %46 = arith.truncf %45 : vector<2x128xf32> to vector<2x128xbf16>
    %c0_24 = arith.constant 0 : index
    %c0_25 = arith.constant 0 : index
    %47 = vector.load %arg7[%c0_24, %c0_25] : memref<128x2xbf16, #tpu.memory_space<vmem>>, vector<128x2xbf16>
    %cst_26 = arith.constant dense<0.000000e+00> : vector<2x2xf32>
    %48 = tpu.matmul %46, %47, %cst_26 {dimension_numbers = #tpu.dot_dimension_numbers<[1], [0], [0], [1], [0, 0, 1, 1], [], []>} : vector<2x128xbf16>, vector<128x2xbf16>, vector<2x2xf32> -> vector<2x2xf32>
    %49 = vector.broadcast %6 : vector<1x2xf32> to vector<2x2xf32>
    %50 = arith.addf %48, %49 : vector<2x2xf32>
    %cst_27 = arith.constant dense<0xFF800000> : vector<2xf32>
    %51 = vector.multi_reduction <maximumf>, %50, %cst_27 [1] : vector<2x2xf32> to vector<2xf32>
    %52 = vector.shape_cast %51 : vector<2xf32> to vector<2x1xf32>
    %53 = vector.broadcast %52 : vector<2x1xf32> to vector<2x2xf32>
    %54 = arith.subf %50, %53 : vector<2x2xf32>
    %55 = math.exp %54 : vector<2x2xf32>
    %cst_28 = arith.constant dense<0.000000e+00> : vector<2xf32>
    %56 = vector.multi_reduction <add>, %55, %cst_28 [1] : vector<2x2xf32> to vector<2xf32>
    %57 = vector.shape_cast %56 : vector<2xf32> to vector<2x1xf32>
    %58 = math.log %57 : vector<2x1xf32>
    %59 = vector.broadcast %58 : vector<2x1xf32> to vector<2x2xf32>
    %60 = arith.subf %54, %59 : vector<2x2xf32>
    %c0_29 = arith.constant 0 : index
    %c0_30 = arith.constant 0 : index
    %61 = vector.load %arg9[%c0_29, %c0_30] : memref<2x2xf32, #tpu.memory_space<vmem>>, vector<2x2xf32>
    tpu.vector_store %arg9[%c0_29, %c0_30], %60 {strides = array<i32>} : memref<2x2xf32, #tpu.memory_space<vmem>>, vector<2x2xf32>,
    return
  }
}

</mosaic_0001>

<llo_original>
// kernel: gcnnet_forward.1
$region0: #{gcnnet_forward.1}
  #allocation0 [shape = 'u32[]', space=smem, size = 0x4, offset = 0x4, fixed_abs, tag = 'smem constant byte address 0x4 - core index']
  #allocation1 [shape = 'u32[144,128]{1,0:T(1,128)}', space=vmem, size = 0x12000, scoped, tag = 'internal scratch']
  %s0 = inlined_call_operand.vmem [shape: bf16[32,32], index: 0, kind: input, shape index: {}]
  %s1 = inlined_call_operand.vmem [shape: bf16[32,16], index: 1, kind: input, shape index: {}]
  %s2 = inlined_call_operand.vmem [shape: bf16[16,32], index: 2, kind: input, shape index: {}]
  %s3 = inlined_call_operand.vmem [shape: bf16[32,160], index: 3, kind: input, shape index: {}]
  %s4 = inlined_call_operand.vmem [shape: bf16[32,160], index: 4, kind: input, shape index: {}]
  %s5 = inlined_call_operand.vmem [shape: bf16[32,128], index: 5, kind: input, shape index: {}]
  %s6 = inlined_call_operand.vmem [shape: bf16[2,32], index: 6, kind: input, shape index: {}]
  %s7 = inlined_call_operand.vmem [shape: bf16[128,2], index: 7, kind: input, shape index: {}]
  %s8 = inlined_call_operand.vmem [shape: f32[8,128], index: 8, kind: input, shape index: {}]
  %s9 = inlined_call_operand.hbm [shape: f32[2,2], index: 9, kind: output, shape index: {}]
  %s10 = sld [smem:[#allocation0]]
  $region46: #{gcnnet_forward.1} parent=0
    _
  %s12 = ssub.s32 1, %s10
  %s13 = scalar_select 0, %s12, %s10
  $region1: #{gcnnet_forward.1} parent=0
    #allocation2 [shape = 'u8[1024]{0}', space=vmem, size = 0x400, scoped, tag = 'output window, operand 0, single buffered']
    #allocation3 [shape = 's32[1]{0}', space=sflag, size = 0x4, scoped, tag = 'scoped memory for gcnnet_forward.1']
    %14 = vsyncpa [#allocation3], 0
    // Predicated region
    $region2: #{gcnnet_forward.1} parent=1 // pred_check
      _
    $region3: #{gcnnet_forward.1} parent=1 // pred_check_branch
      %16 = sbr.rel (0) target = $region5
    $region4: #{gcnnet_forward.1} parent=1 // pred_region
      _
    $region5: #{gcnnet_forward.1} parent=1 // pred_fallthru
      _
    // Predicated region
    $region6: #{gcnnet_forward.1} parent=1 // pred_check
      _
    $region7: #{gcnnet_forward.1} parent=1 // pred_check_branch
      %18 = sbr.rel (0) target = $region9
    $region8: #{gcnnet_forward.1} parent=1 // pred_region
      _
    $region9: #{gcnnet_forward.1} parent=1 // pred_fallthru
      _
    // Predicated region
    $region10: #{gcnnet_forward.1} parent=1 // pred_check
      _
    $region11: #{gcnnet_forward.1} parent=1 // pred_check_branch
      %20 = sbr.rel (0) target = $region13
    $region12: #{gcnnet_forward.1} parent=1 // pred_region
      _
    $region13: #{gcnnet_forward.1} parent=1 // pred_fallthru
      _
    // Predicated region
    $region14: #{gcnnet_forward.1} parent=1 // pred_check
      _
    $region15: #{gcnnet_forward.1} parent=1 // pred_check_branch
      %22 = sbr.rel (0) target = $region17
    $region16: #{gcnnet_forward.1} parent=1 // pred_region
      _
    $region17: #{gcnnet_forward.1} parent=1 // pred_fallthru
      _
    // Predicated region
    $region18: #{gcnnet_forward.1} parent=1 // pred_check
      _
    $region19: #{gcnnet_forward.1} parent=1 // pred_check_branch
      %24 = sbr.rel (0) target = $region21
    $region20: #{gcnnet_forward.1} parent=1 // pred_region
      _
    $region21: #{gcnnet_forward.1} parent=1 // pred_fallthru
      _
    // Predicated region
    $region22: #{gcnnet_forward.1} parent=1 // pred_check
      _
    $region23: #{gcnnet_forward.1} parent=1 // pred_check_branch
      %26 = sbr.rel (0) target = $region25
    $region24: #{gcnnet_forward.1} parent=1 // pred_region
      _
    $region25: #{gcnnet_forward.1} parent=1 // pred_fallthru
      _
    // Predicated region
    $region26: #{gcnnet_forward.1} parent=1 // pred_check
      _
    $region27: #{gcnnet_forward.1} parent=1 // pred_check_branch
      %28 = sbr.rel (0) target = $region29
    $region28: #{gcnnet_forward.1} parent=1 // pred_region
      _
    $region29: #{gcnnet_forward.1} parent=1 // pred_fallthru
      _
    // Predicated region
    $region30: #{gcnnet_forward.1} parent=1 // pred_check
      _
    $region31: #{gcnnet_forward.1} parent=1 // pred_check_branch
      %30 = sbr.rel (0) target = $region33
    $region32: #{gcnnet_forward.1} parent=1 // pred_region
      _
    $region33: #{gcnnet_forward.1} parent=1 // pred_fallthru
      _
    // Predicated region
    $region34: #{gcnnet_forward.1} parent=1 // pred_check
      _
    $region35: #{gcnnet_forward.1} parent=1 // pred_check_branch
      %32 = sbr.rel (0) target = $region37
    $region36: #{gcnnet_forward.1} parent=1 // pred_region
      _
    $region37: #{gcnnet_forward.1} parent=1 // pred_fallthru
      _
    %v34 = vld [vmem:[%s0] sm:$0xf]
    %v35 = vld [vmem:[%s0 + $0x4] sm:$0xf]
    %v36 = vld [vmem:[%s0 + $0x8] sm:$0xf]
    %v37 = vld [vmem:[%s0 + $0xc] sm:$0xf]
    %v38 = vld [vmem:[%s8] sm:$0xff]
    %v39 = vld [vmem:[%s1] sm:$0xf]
    %v40 = vld [vmem:[%s1 + $0x4] sm:$0xf]
    %v41 = vld [vmem:[%s1 + $0x8] sm:$0xf]
    %v42 = vld [vmem:[%s1 + $0xc] sm:$0xf]
    %v47 = vunpack.c.l.b16 %v34
    %v48 = vunpack.c.l.b16 %v35
    %v49 = vunpack.c.l.b16 %v36
    %v50 = vunpack.c.l.b16 %v37
    %v51 = vpack.c.b16 %v48, %v47
    %v52 = vpack.c.b16 %v50, %v49
    %v57 = vunpack.c.l.b16 %v39
    %v58 = vunpack.c.l.b16 %v40
    %v59 = vunpack.c.l.b16 %v41
    %v60 = vunpack.c.l.b16 %v42
    %v61 = vpack.c.b16 %v58, %v57
    %v62 = vpack.c.b16 %v60, %v59
    %vm65 = vcmask 261120
    %v67 = vsel %vm65, %v51, 0
    %v70 = vsel %vm65, %v52, 0
    %72 = vmatprep.subr.bf16.mxu0 0
    %73 = vmatpush1.bf16.msra.mxu0 %v61
    %74 = vmatprep.subr.bf16.mxu0 0
    %75 = vmatpush1.bf16.msra.mxu0 %v62
    %76 = vmatprep.subr.bf16.mxu0 0
    %77 = vmatpush1.bf16.msra.mxu0 0
    %78 = vmatprep.subr.bf16.mxu0 0
    %79 = vmatpush1.bf16.msra.mxu0 0
    %80 = vmatprep.subr.bf16.mxu0 0
    %81 = vmatpush1.bf16.msra.mxu0 0
    %82 = vmatprep.subr.bf16.mxu0 0
    %83 = vmatpush1.bf16.msra.mxu0 0
    %84 = vmatprep.subr.bf16.mxu0 0
    %85 = vmatpush1.bf16.msra.mxu0 0
    %86 = vmatprep.subr.bf16.mxu0 0
    %87 = vmatpush1.bf16.msra.mxu0 0
    %88 = vmatprep.subr.bf16.mxu0 0
    %89 = vmatpush1.bf16.msra.mxu0 0
    %90 = vmatprep.subr.bf16.mxu0 0
    %91 = vmatpush1.bf16.msra.mxu0 0
    %92 = vmatprep.subr.bf16.mxu0 0
    %93 = vmatpush1.bf16.msra.mxu0 0
    %94 = vmatprep.subr.bf16.mxu0 0
    %95 = vmatpush1.bf16.msra.mxu0 0
    %96 = vmatprep.subr.bf16.mxu0 0
    %97 = vmatpush1.bf16.msra.mxu0 0
    %98 = vmatprep.subr.bf16.mxu0 0
    %99 = vmatpush1.bf16.msra.mxu0 0
    %100 = vmatprep.subr.bf16.mxu0 0
    %101 = vmatpush1.bf16.msra.mxu0 0
    %102 = vmatprep.subr.bf16.mxu0 0
    %103 = vmatpush1.bf16.msra.mxu0 0
    %104 = vmatprep.mubr.bf16.mxu0 0
    %105 = vmatmul.mubr.bf16.gmra.mrb[0].mxu0 %v67
    %v106 = vpop.f32.mrb[0].mxu0
    %v107 = vadd.f32 0.0, %v106
    %v108 = vpop.f32.mrb[0].mxu0
    %v109 = vpop.f32.mrb[0].mxu0
    %v110 = vadd.f32 0.0, %v109
    %v111 = vpop.f32.mrb[0].mxu0
    %112 = vmatprep.mubr.bf16.mxu0 0
    %113 = vmatmul.mubr.bf16.gmra.mrb[0].mxu0 %v70
    %v114 = vpop.f32.mrb[0].mxu0
    %v115 = vadd.f32 0.0, %v114
    %v116 = vpop.f32.mrb[0].mxu0
    %v117 = vpop.f32.mrb[0].mxu0
    %v118 = vadd.f32 0.0, %v117
    %v119 = vpop.f32.mrb[0].mxu0
    %120 = vdwg.mxu0
    %v121 = vpack.c.bf16 %v110, %v107
    %v122 = vpack.c.bf16 %v118, %v115
    %v123 = vld [vmem:[%s2] sm:$0xf]
    %v124 = vld [vmem:[%s2 + $0x4] sm:$0xf]
    %v125 = vlaneseq
    %v126 = vshrl.u32 %v125, 7
    %v127 = vsub.s32 0, %v126
    %v128 = vrot.slane %v38, %v127
    %v131 = vunpack.c.l.b16 %v123
    %v132 = vunpack.c.l.b16 %v124
    %v133 = vpack.c.b16 %v132, %v131
    %vm135 = vcmask 130048
    %v137 = vsel %vm135, %v121, 0
    %v140 = vsel %vm135, %v122, 0
    %142 = vmatprep.subr.bf16.mxu0 0
    %143 = vmatpush1.bf16.msra.mxu0 %v133
    %144 = vmatprep.subr.bf16.mxu0 0
    %145 = vmatpush1.bf16.msra.mxu0 0
    %146 = vmatprep.subr.bf16.mxu0 0
    %147 = vmatpush1.bf16.msra.mxu0 0
    %148 = vmatprep.subr.bf16.mxu0 0
    %149 = vmatpush1.bf16.msra.mxu0 0
    %150 = vmatprep.subr.bf16.mxu0 0
    %151 = vmatpush1.bf16.msra.mxu0 0
    %152 = vmatprep.subr.bf16.mxu0 0
    %153 = vmatpush1.bf16.msra.mxu0 0
    %154 = vmatprep.subr.bf16.mxu0 0
    %155 = vmatpush1.bf16.msra.mxu0 0
    %156 = vmatprep.subr.bf16.mxu0 0
    %157 = vmatpush1.bf16.msra.mxu0 0
    %158 = vmatprep.subr.bf16.mxu0 0
    %159 = vmatpush1.bf16.msra.mxu0 0
    %160 = vmatprep.subr.bf16.mxu0 0
    %161 = vmatpush1.bf16.msra.mxu0 0
    %162 = vmatprep.subr.bf16.mxu0 0
    %163 = vmatpush1.bf16.msra.mxu0 0
    %164 = vmatprep.subr.bf16.mxu0 0
    %165 = vmatpush1.bf16.msra.mxu0 0
    %166 = vmatprep.subr.bf16.mxu0 0
    %167 = vmatpush1.bf16.msra.mxu0 0
    %168 = vmatprep.subr.bf16.mxu0 0
    %169 = vmatpush1.bf16.msra.mxu0 0
    %170 = vmatprep.subr.bf16.mxu0 0
    %171 = vmatpush1.bf16.msra.mxu0 0
    %172 = vmatprep.subr.bf16.mxu0 0
    %173 = vmatpush1.bf16.msra.mxu0 0
    %174 = vmatprep.mubr.bf16.mxu0 0
    %175 = vmatmul.mubr.bf16.gmra.mrb[0].mxu0 %v137
    %v176 = vpop.f32.mrb[0].mxu0
    %v177 = vadd.f32 %v128, %v176
    %v178 = vpop.f32.mrb[0].mxu0
    %v179 = vpop.f32.mrb[0].mxu0
    %v180 = vadd.f32 %v128, %v179
    %v181 = vpop.f32.mrb[0].mxu0
    %182 = vmatprep.mubr.bf16.mxu0 0
    %183 = vmatmul.mubr.bf16.gmra.mrb[0].mxu0 %v140
    %v184 = vpop.f32.mrb[0].mxu0
    %v185 = vadd.f32 %v128, %v184
    %v186 = vpop.f32.mrb[0].mxu0
    %v187 = vpop.f32.mrb[0].mxu0
    %v188 = vadd.f32 %v128, %v187
    %v189 = vpop.f32.mrb[0].mxu0
    %190 = vdwg.mxu0
    %v191 = vmax.f32 %v177, 0.0
    %v192 = vmax.f32 %v180, 0.0
    %v193 = vmax.f32 %v185, 0.0
    %v194 = vmax.f32 %v188, 0.0
    %v195 = vpack.c.bf16 %v192, %v191
    %v196 = vpack.c.bf16 %v194, %v193
    %v197 = vld [vmem:[%s3] sm:$0xff]
    %v198 = vld [vmem:[%s3 + $0x8] sm:$0xff]
    %v199 = vld [vmem:[%s3 + $0x10] sm:$0xff]
    %v200 = vld [vmem:[%s3 + $0x18] sm:$0xff]
    %v205 = vunpack.c.l.b16 %v197
    %v206 = vunpack.c.h.b16 %v197
    %v207 = vunpack.c.l.b16 %v198
    %v208 = vunpack.c.h.b16 %v198
    %v209 = vunpack.c.l.b16 %v199
    %v210 = vunpack.c.h.b16 %v199
    %v211 = vunpack.c.l.b16 %v200
    %v212 = vunpack.c.h.b16 %v200
    %v213 = vpack.c.b16 %v207, %v205
    %v214 = vpack.c.b16 %v208, %v206
    %v215 = vpack.c.b16 %v211, %v209
    %v216 = vpack.c.b16 %v212, %v210
    %v222 = vsel %vm65, %v195, 0
    %v225 = vsel %vm65, %v196, 0
    %227 = vmatprep.subr.bf16.mxu0 %v214
    %228 = vmatpush1.bf16.msra.mxu0 %v213
    %229 = vmatprep.subr.bf16.mxu0 %v216
    %230 = vmatpush1.bf16.msra.mxu0 %v215
    %231 = vmatprep.subr.bf16.mxu0 0
    %232 = vmatpush1.bf16.msra.mxu0 0
    %233 = vmatprep.subr.bf16.mxu0 0
    %234 = vmatpush1.bf16.msra.mxu0 0
    %235 = vmatprep.subr.bf16.mxu0 0
    %236 = vmatpush1.bf16.msra.mxu0 0
    %237 = vmatprep.subr.bf16.mxu0 0
    %238 = vmatpush1.bf16.msra.mxu0 0
    %239 = vmatprep.subr.bf16.mxu0 0
    %240 = vmatpush1.bf16.msra.mxu0 0
    %241 = vmatprep.subr.bf16.mxu0 0
    %242 = vmatpush1.bf16.msra.mxu0 0
    %243 = vmatprep.subr.bf16.mxu0 0
    %244 = vmatpush1.bf16.msra.mxu0 0
    %245 = vmatprep.subr.bf16.mxu0 0
    %246 = vmatpush1.bf16.msra.mxu0 0
    %247 = vmatprep.subr.bf16.mxu0 0
    %248 = vmatpush1.bf16.msra.mxu0 0
    %249 = vmatprep.subr.bf16.mxu0 0
    %250 = vmatpush1.bf16.msra.mxu0 0
    %251 = vmatprep.subr.bf16.mxu0 0
    %252 = vmatpush1.bf16.msra.mxu0 0
    %253 = vmatprep.subr.bf16.mxu0 0
    %254 = vmatpush1.bf16.msra.mxu0 0
    %255 = vmatprep.subr.bf16.mxu0 0
    %256 = vmatpush1.bf16.msra.mxu0 0
    %257 = vmatprep.subr.bf16.mxu0 0
    %258 = vmatpush1.bf16.msra.mxu0 0
    %259 = vmatprep.mubr.bf16.mxu0 0
    %260 = vmatmul.mubr.bf16.gmra.mrb[0].mxu0 %v222
    %v261 = vpop.f32.mrb[0].mxu0
    %v262 = vadd.f32 0.0, %v261
    %v263 = vpop.f32.mrb[0].mxu0
    %v264 = vadd.f32 0.0, %v263
    %v265 = vpop.f32.mrb[0].mxu0
    %v266 = vadd.f32 0.0, %v265
    %v267 = vpop.f32.mrb[0].mxu0
    %v268 = vadd.f32 0.0, %v267
    %269 = vmatprep.mubr.bf16.mxu0 0
    %270 = vmatmul.mubr.bf16.gmra.mrb[0].mxu0 %v225
    %v271 = vpop.f32.mrb[0].mxu0
    %v272 = vadd.f32 0.0, %v271
    %v273 = vpop.f32.mrb[0].mxu0
    %v274 = vadd.f32 0.0, %v273
    %v275 = vpop.f32.mrb[0].mxu0
    %v276 = vadd.f32 0.0, %v275
    %v277 = vpop.f32.mrb[0].mxu0
    %v278 = vadd.f32 0.0, %v277
    %279 = vdwg.mxu0
    %v280 = vpack.c.bf16 %v268, %v264
    %v281 = vpack.c.bf16 %v278, %v274
    %v282 = vlaneseq
    %v283 = vshrl.u32 %v282, 7
    %v284 = vsub.s32 1, %v283
    %v285 = vrot.slane %v38, %v284
    %286 = vmatprep.subr.bf16.mxu0 0
    %287 = vmatpush1.bf16.msra.mxu0 %v280
    %288 = vmatprep.subr.bf16.mxu0 0
    %289 = vmatpush1.bf16.msra.mxu0 %v281
    %290 = vmatprep.subr.bf16.mxu0 0
    %291 = vmatpush1.bf16.msra.mxu0 0
    %292 = vmatprep.subr.bf16.mxu0 0
    %293 = vmatpush1.bf16.msra.mxu0 0
    %294 = vmatprep.subr.bf16.mxu0 0
    %295 = vmatpush1.bf16.msra.mxu0 0
    %296 = vmatprep.subr.bf16.mxu0 0
    %297 = vmatpush1.bf16.msra.mxu0 0
    %298 = vmatprep.subr.bf16.mxu0 0
    %299 = vmatpush1.bf16.msra.mxu0 0
    %300 = vmatprep.subr.bf16.mxu0 0
    %301 = vmatpush1.bf16.msra.mxu0 0
    %302 = vmatprep.subr.bf16.mxu0 0
    %303 = vmatpush1.bf16.msra.mxu0 0
    %304 = vmatprep.subr.bf16.mxu0 0
    %305 = vmatpush1.bf16.msra.mxu0 0
    %306 = vmatprep.subr.bf16.mxu0 0
    %307 = vmatpush1.bf16.msra.mxu0 0
    %308 = vmatprep.subr.bf16.mxu0 0
    %309 = vmatpush1.bf16.msra.mxu0 0
    %310 = vmatprep.subr.bf16.mxu0 0
    %311 = vmatpush1.bf16.msra.mxu0 0
    %312 = vmatprep.subr.bf16.mxu0 0
    %313 = vmatpush1.bf16.msra.mxu0 0
    %314 = vmatprep.subr.bf16.mxu0 0
    %315 = vmatpush1.bf16.msra.mxu0 0
    %316 = vmatprep.subr.bf16.mxu0 0
    %317 = vmatpush1.bf16.msra.mxu0 0
    %318 = vmatprep.mubr.bf16.mxu0 0
    %319 = vmatmul.mubr.bf16.gmra.mrb[0].mxu0 %v67
    %v320 = vpop.f32.mrb[0].mxu0
    %v321 = vadd.f32 %v285, %v320
    %v322 = vpop.f32.mrb[0].mxu0
    %v323 = vpop.f32.mrb[0].mxu0
    %v324 = vadd.f32 %v285, %v323
    %v325 = vpop.f32.mrb[0].mxu0
    %326 = vmatprep.mubr.bf16.mxu0 0
    %327 = vmatmul.mubr.bf16.gmra.mrb[0].mxu0 %v70
    %v328 = vpop.f32.mrb[0].mxu0
    %v329 = vadd.f32 %v285, %v328
    %v330 = vpop.f32.mrb[0].mxu0
    %v331 = vpop.f32.mrb[0].mxu0
    %v332 = vadd.f32 %v285, %v331
    %v333 = vpop.f32.mrb[0].mxu0
    %334 = vdwg.mxu0
    %v335 = vpack.c.bf16 %v324, %v321
    %v336 = vpack.c.bf16 %v332, %v329
    %v337 = vld [vmem:[%s4] sm:$0xff]
    %v338 = vld [vmem:[%s4 + $0x8] sm:$0xff]
    %v339 = vld [vmem:[%s4 + $0x10] sm:$0xff]
    %v340 = vld [vmem:[%s4 + $0x18] sm:$0xff]
    %v345 = vunpack.c.l.b16 %v337
    %v346 = vunpack.c.h.b16 %v337
    %v347 = vunpack.c.l.b16 %v338
    %v348 = vunpack.c.h.b16 %v338
    %v349 = vunpack.c.l.b16 %v339
    %v350 = vunpack.c.h.b16 %v339
    %v351 = vunpack.c.l.b16 %v340
    %v352 = vunpack.c.h.b16 %v340
    %v353 = vpack.c.b16 %v347, %v345
    %v354 = vpack.c.b16 %v348, %v346
    %v355 = vpack.c.b16 %v351, %v349
    %v356 = vpack.c.b16 %v352, %v350
    %v362 = vsel %vm65, %v335, 0
    %v365 = vsel %vm65, %v336, 0
    %367 = vmatprep.subr.bf16.mxu0 %v354
    %368 = vmatpush1.bf16.msra.mxu0 %v353
    %369 = vmatprep.subr.bf16.mxu0 %v356
    %370 = vmatpush1.bf16.msra.mxu0 %v355
    %371 = vmatprep.subr.bf16.mxu0 0
    %372 = vmatpush1.bf16.msra.mxu0 0
    %373 = vmatprep.subr.bf16.mxu0 0
    %374 = vmatpush1.bf16.msra.mxu0 0
    %375 = vmatprep.subr.bf16.mxu0 0
    %376 = vmatpush1.bf16.msra.mxu0 0
    %377 = vmatprep.subr.bf16.mxu0 0
    %378 = vmatpush1.bf16.msra.mxu0 0
    %379 = vmatprep.subr.bf16.mxu0 0
    %380 = vmatpush1.bf16.msra.mxu0 0
    %381 = vmatprep.subr.bf16.mxu0 0
    %382 = vmatpush1.bf16.msra.mxu0 0
    %383 = vmatprep.subr.bf16.mxu0 0
    %384 = vmatpush1.bf16.msra.mxu0 0
    %385 = vmatprep.subr.bf16.mxu0 0
    %386 = vmatpush1.bf16.msra.mxu0 0
    %387 = vmatprep.subr.bf16.mxu0 0
    %388 = vmatpush1.bf16.msra.mxu0 0
    %389 = vmatprep.subr.bf16.mxu0 0
    %390 = vmatpush1.bf16.msra.mxu0 0
    %391 = vmatprep.subr.bf16.mxu0 0
    %392 = vmatpush1.bf16.msra.mxu0 0
    %393 = vmatprep.subr.bf16.mxu0 0
    %394 = vmatpush1.bf16.msra.mxu0 0
    %395 = vmatprep.subr.bf16.mxu0 0
    %396 = vmatpush1.bf16.msra.mxu0 0
    %397 = vmatprep.subr.bf16.mxu0 0
    %398 = vmatpush1.bf16.msra.mxu0 0
    %399 = vmatprep.mubr.bf16.mxu0 0
    %400 = vmatmul.mubr.bf16.gmra.mrb[0].mxu0 %v362
    %v401 = vpop.f32.mrb[0].mxu0
    %v402 = vadd.f32 0.0, %v401
    %v403 = vpop.f32.mrb[0].mxu0
    %v404 = vadd.f32 0.0, %v403
    %v405 = vpop.f32.mrb[0].mxu0
    %v406 = vadd.f32 0.0, %v405
    %v407 = vpop.f32.mrb[0].mxu0
    %v408 = vadd.f32 0.0, %v407
    %409 = vmatprep.mubr.bf16.mxu0 0
    %410 = vmatmul.mubr.bf16.gmra.mrb[0].mxu0 %v365
    %v411 = vpop.f32.mrb[0].mxu0
    %v412 = vadd.f32 0.0, %v411
    %v413 = vpop.f32.mrb[0].mxu0
    %v414 = vadd.f32 0.0, %v413
    %v415 = vpop.f32.mrb[0].mxu0
    %v416 = vadd.f32 0.0, %v415
    %v417 = vpop.f32.mrb[0].mxu0
    %v418 = vadd.f32 0.0, %v417
    %419 = vdwg.mxu0
    %v420 = vadd.f32 %v262, %v402
    %v421 = vadd.f32 %v266, %v406
    %v422 = vadd.f32 %v272, %v412
    %v423 = vadd.f32 %v276, %v416
    %v424 = vpack.c.bf16 %v408, %v404
    %v425 = vpack.c.bf16 %v418, %v414
    %v426 = vlaneseq
    %v427 = vshrl.u32 %v426, 7
    %v428 = vsub.s32 2, %v427
    %v429 = vrot.slane %v38, %v428
    %430 = vmatprep.subr.bf16.mxu0 0
    %431 = vmatpush1.bf16.msra.mxu0 %v424
    %432 = vmatprep.subr.bf16.mxu0 0
    %433 = vmatpush1.bf16.msra.mxu0 %v425
    %434 = vmatprep.subr.bf16.mxu0 0
    %435 = vmatpush1.bf16.msra.mxu0 0
    %436 = vmatprep.subr.bf16.mxu0 0
    %437 = vmatpush1.bf16.msra.mxu0 0
    %438 = vmatprep.subr.bf16.mxu0 0
    %439 = vmatpush1.bf16.msra.mxu0 0
    %440 = vmatprep.subr.bf16.mxu0 0
    %441 = vmatpush1.bf16.msra.mxu0 0
    %442 = vmatprep.subr.bf16.mxu0 0
    %443 = vmatpush1.bf16.msra.mxu0 0
    %444 = vmatprep.subr.bf16.mxu0 0
    %445 = vmatpush1.bf16.msra.mxu0 0
    %446 = vmatprep.subr.bf16.mxu0 0
    %447 = vmatpush1.bf16.msra.mxu0 0
    %448 = vmatprep.subr.bf16.mxu0 0
    %449 = vmatpush1.bf16.msra.mxu0 0
    %450 = vmatprep.subr.bf16.mxu0 0
    %451 = vmatpush1.bf16.msra.mxu0 0
    %452 = vmatprep.subr.bf16.mxu0 0
    %453 = vmatpush1.bf16.msra.mxu0 0
    %454 = vmatprep.subr.bf16.mxu0 0
    %455 = vmatpush1.bf16.msra.mxu0 0
    %456 = vmatprep.subr.bf16.mxu0 0
    %457 = vmatpush1.bf16.msra.mxu0 0
    %458 = vmatprep.subr.bf16.mxu0 0
    %459 = vmatpush1.bf16.msra.mxu0 0
    %460 = vmatprep.subr.bf16.mxu0 0
    %461 = vmatpush1.bf16.msra.mxu0 0
    %462 = vmatprep.mubr.bf16.mxu0 0
    %463 = vmatmul.mubr.bf16.gmra.mrb[0].mxu0 %v67
    %v464 = vpop.f32.mrb[0].mxu0
    %v465 = vadd.f32 %v429, %v464
    %v466 = vpop.f32.mrb[0].mxu0
    %v467 = vpop.f32.mrb[0].mxu0
    %v468 = vadd.f32 %v429, %v467
    %v469 = vpop.f32.mrb[0].mxu0
    %470 = vmatprep.mubr.bf16.mxu0 0
    %471 = vmatmul.mubr.bf16.gmra.mrb[0].mxu0 %v70
    %v472 = vpop.f32.mrb[0].mxu0
    %v473 = vadd.f32 %v429, %v472
    %v474 = vpop.f32.mrb[0].mxu0
    %v475 = vpop.f32.mrb[0].mxu0
    %v476 = vadd.f32 %v429, %v475
    %v477 = vpop.f32.mrb[0].mxu0
    %478 = vdwg.mxu0
    %v479 = vpack.c.bf16 %v468, %v465
    %v480 = vpack.c.bf16 %v476, %v473
    %v481 = vld [vmem:[%s5] sm:$0xf]
    %v482 = vld [vmem:[%s5 + $0x4] sm:$0xf]
    %v483 = vld [vmem:[%s5 + $0x8] sm:$0xf]
    %v484 = vld [vmem:[%s5 + $0xc] sm:$0xf]
    %v489 = vunpack.c.l.b16 %v481
    %v490 = vunpack.c.l.b16 %v482
    %v491 = vunpack.c.l.b16 %v483
    %v492 = vunpack.c.l.b16 %v484
    %v493 = vpack.c.b16 %v490, %v489
    %v494 = vpack.c.b16 %v492, %v491
    %v498 = vsel %vm65, %v479, 0
    %v501 = vsel %vm65, %v480, 0
    %503 = vmatprep.subr.bf16.mxu0 0
    %504 = vmatpush1.bf16.msra.mxu0 %v493
    %505 = vmatprep.subr.bf16.mxu0 0
    %506 = vmatpush1.bf16.msra.mxu0 %v494
    %507 = vmatprep.subr.bf16.mxu0 0
    %508 = vmatpush1.bf16.msra.mxu0 0
    %509 = vmatprep.subr.bf16.mxu0 0
    %510 = vmatpush1.bf16.msra.mxu0 0
    %511 = vmatprep.subr.bf16.mxu0 0
    %512 = vmatpush1.bf16.msra.mxu0 0
    %513 = vmatprep.subr.bf16.mxu0 0
    %514 = vmatpush1.bf16.msra.mxu0 0
    %515 = vmatprep.subr.bf16.mxu0 0
    %516 = vmatpush1.bf16.msra.mxu0 0
    %517 = vmatprep.subr.bf16.mxu0 0
    %518 = vmatpush1.bf16.msra.mxu0 0
    %519 = vmatprep.subr.bf16.mxu0 0
    %520 = vmatpush1.bf16.msra.mxu0 0
    %521 = vmatprep.subr.bf16.mxu0 0
    %522 = vmatpush1.bf16.msra.mxu0 0
    %523 = vmatprep.subr.bf16.mxu0 0
    %524 = vmatpush1.bf16.msra.mxu0 0
    %525 = vmatprep.subr.bf16.mxu0 0
    %526 = vmatpush1.bf16.msra.mxu0 0
    %527 = vmatprep.subr.bf16.mxu0 0
    %528 = vmatpush1.bf16.msra.mxu0 0
    %529 = vmatprep.subr.bf16.mxu0 0
    %530 = vmatpush1.bf16.msra.mxu0 0
    %531 = vmatprep.subr.bf16.mxu0 0
    %532 = vmatpush1.bf16.msra.mxu0 0
    %533 = vmatprep.subr.bf16.mxu0 0
    %534 = vmatpush1.bf16.msra.mxu0 0
    %535 = vmatprep.mubr.bf16.mxu0 0
    %536 = vmatmul.mubr.bf16.gmra.mrb[0].mxu0 %v498
    %v537 = vpop.f32.mrb[0].mxu0
    %v538 = vadd.f32 0.0, %v537
    %v539 = vpop.f32.mrb[0].mxu0
    %v540 = vpop.f32.mrb[0].mxu0
    %v541 = vadd.f32 0.0, %v540
    %v542 = vpop.f32.mrb[0].mxu0
    %543 = vmatprep.mubr.bf16.mxu0 0
    %544 = vmatmul.mubr.bf16.gmra.mrb[0].mxu0 %v501
    %v545 = vpop.f32.mrb[0].mxu0
    %v546 = vadd.f32 0.0, %v545
    %v547 = vpop.f32.mrb[0].mxu0
    %v548 = vpop.f32.mrb[0].mxu0
    %v549 = vadd.f32 0.0, %v548
    %v550 = vpop.f32.mrb[0].mxu0
    %551 = vdwg.mxu0
    %v552 = vadd.f32 %v420, %v538
    %v553 = vadd.f32 %v421, %v541
    %v554 = vadd.f32 %v422, %v546
    %v555 = vadd.f32 %v423, %v549
    %v556 = vlaneseq
    %v557 = vshrl.u32 %v556, 7
    %v558 = vsub.s32 3, %v557
    %v559 = vrot.slane %v38, %v558
    %v560 = vadd.f32 %v552, %v559
    %v561 = vadd.f32 %v553, %v559
    %v562 = vadd.f32 %v554, %v559
    %v563 = vadd.f32 %v555, %v559
    %v564 = vmax.f32 %v560, 0.0
    %v565 = vmax.f32 %v561, 0.0
    %v566 = vmax.f32 %v562, 0.0
    %v567 = vmax.f32 %v563, 0.0
    %v568 = vld [vmem:[%s6] sm:$0x1]
    %v569 = vpack.c.bf16 %v565, %v564
    %v570 = vpack.c.bf16 %v567, %v566
    %v572 = vsel %vm65, %v568, 0
    %574 = vmatprep.subr.bf16.mxu0 0
    %575 = vmatpush1.bf16.msra.mxu0 %v569
    %576 = vmatprep.subr.bf16.mxu0 0
    %577 = vmatpush1.bf16.msra.mxu0 %v570
    %578 = vmatprep.subr.bf16.mxu0 0
    %579 = vmatpush1.bf16.msra.mxu0 0
    %580 = vmatprep.subr.bf16.mxu0 0
    %581 = vmatpush1.bf16.msra.mxu0 0
    %582 = vmatprep.subr.bf16.mxu0 0
    %583 = vmatpush1.bf16.msra.mxu0 0
    %584 = vmatprep.subr.bf16.mxu0 0
    %585 = vmatpush1.bf16.msra.mxu0 0
    %586 = vmatprep.subr.bf16.mxu0 0
    %587 = vmatpush1.bf16.msra.mxu0 0
    %588 = vmatprep.subr.bf16.mxu0 0
    %589 = vmatpush1.bf16.msra.mxu0 0
    %590 = vmatprep.subr.bf16.mxu0 0
    %591 = vmatpush1.bf16.msra.mxu0 0
    %592 = vmatprep.subr.bf16.mxu0 0
    %593 = vmatpush1.bf16.msra.mxu0 0
    %594 = vmatprep.subr.bf16.mxu0 0
    %595 = vmatpush1.bf16.msra.mxu0 0
    %596 = vmatprep.subr.bf16.mxu0 0
    %597 = vmatpush1.bf16.msra.mxu0 0
    %598 = vmatprep.subr.bf16.mxu0 0
    %599 = vmatpush1.bf16.msra.mxu0 0
    %600 = vmatprep.subr.bf16.mxu0 0
    %601 = vmatpush1.bf16.msra.mxu0 0
    %602 = vmatprep.subr.bf16.mxu0 0
    %603 = vmatpush1.bf16.msra.mxu0 0
    %604 = vmatprep.subr.bf16.mxu0 0
    %605 = vmatpush1.bf16.msra.mxu0 0
    %606 = vmatprep.mubr.bf16.mxu0 0
    %607 = vmatmul.mubr.bf16.gmra.mrb[0].mxu0 %v572
    %v608 = vpop.f32.mrb[0].mxu0
    %v609 = vadd.f32 0.0, %v608
    %v610 = vpop.f32.mrb[0].mxu0
    %v611 = vpop.f32.mrb[0].mxu0
    %v612 = vpop.f32.mrb[0].mxu0
    %613 = vdwg.mxu0
    %v614 = vpack.c.bf16 %v609, %v609
    %v615 = vld [vmem:[%s7] sm:$0xf]
    %v616 = vld [vmem:[%s7 + $0x4] sm:$0xf]
    %v617 = vld [vmem:[%s7 + $0x8] sm:$0xf]
    %v618 = vld [vmem:[%s7 + $0xc] sm:$0xf]
    %v619 = vld [vmem:[%s7 + $0x10] sm:$0xf]
    %v620 = vld [vmem:[%s7 + $0x14] sm:$0xf]
    %v621 = vld [vmem:[%s7 + $0x18] sm:$0xf]
    %v622 = vld [vmem:[%s7 + $0x1c] sm:$0xf]
    %v623 = vld [vmem:[%s7 + $0x20] sm:$0xf]
    %v624 = vld [vmem:[%s7 + $0x24] sm:$0xf]
    %v625 = vld [vmem:[%s7 + $0x28] sm:$0xf]
    %v626 = vld [vmem:[%s7 + $0x2c] sm:$0xf]
    %v627 = vld [vmem:[%s7 + $0x30] sm:$0xf]
    %v628 = vld [vmem:[%s7 + $0x34] sm:$0xf]
    %v629 = vld [vmem:[%s7 + $0x38] sm:$0xf]
    %v630 = vld [vmem:[%s7 + $0x3c] sm:$0xf]
    %v631 = vlaneseq
    %v632 = vshrl.u32 %v631, 7
    %v633 = vsub.s32 4, %v632
    %v634 = vrot.slane %v38, %v633
    %v651 = vunpack.c.l.b16 %v615
    %v652 = vunpack.c.l.b16 %v616
    %v653 = vunpack.c.l.b16 %v617
    %v654 = vunpack.c.l.b16 %v618
    %v655 = vunpack.c.l.b16 %v619
    %v656 = vunpack.c.l.b16 %v620
    %v657 = vunpack.c.l.b16 %v621
    %v658 = vunpack.c.l.b16 %v622
    %v659 = vunpack.c.l.b16 %v623
    %v660 = vunpack.c.l.b16 %v624
    %v661 = vunpack.c.l.b16 %v625
    %v662 = vunpack.c.l.b16 %v626
    %v663 = vunpack.c.l.b16 %v627
    %v664 = vunpack.c.l.b16 %v628
    %v665 = vunpack.c.l.b16 %v629
    %v666 = vunpack.c.l.b16 %v630
    %v667 = vpack.c.b16 %v652, %v651
    %v668 = vpack.c.b16 %v654, %v653
    %v669 = vpack.c.b16 %v656, %v655
    %v670 = vpack.c.b16 %v658, %v657
    %v671 = vpack.c.b16 %v660, %v659
    %v672 = vpack.c.b16 %v662, %v661
    %v673 = vpack.c.b16 %v664, %v663
    %v674 = vpack.c.b16 %v666, %v665
    %683 = vmatprep.subr.bf16.mxu0 0
    %684 = vmatpush1.bf16.msra.mxu0 %v667
    %685 = vmatprep.subr.bf16.mxu0 0
    %686 = vmatpush1.bf16.msra.mxu0 %v668
    %687 = vmatprep.subr.bf16.mxu0 0
    %688 = vmatpush1.bf16.msra.mxu0 %v669
    %689 = vmatprep.subr.bf16.mxu0 0
    %690 = vmatpush1.bf16.msra.mxu0 %v670
    %691 = vmatprep.subr.bf16.mxu0 0
    %692 = vmatpush1.bf16.msra.mxu0 %v671
    %693 = vmatprep.subr.bf16.mxu0 0
    %694 = vmatpush1.bf16.msra.mxu0 %v672
    %695 = vmatprep.subr.bf16.mxu0 0
    %696 = vmatpush1.bf16.msra.mxu0 %v673
    %697 = vmatprep.subr.bf16.mxu0 0
    %698 = vmatpush1.bf16.msra.mxu0 %v674
    %699 = vmatprep.subr.bf16.mxu0 0
    %700 = vmatpush1.bf16.msra.mxu0 0
    %701 = vmatprep.subr.bf16.mxu0 0
    %702 = vmatpush1.bf16.msra.mxu0 0
    %703 = vmatprep.subr.bf16.mxu0 0
    %704 = vmatpush1.bf16.msra.mxu0 0
    %705 = vmatprep.subr.bf16.mxu0 0
    %706 = vmatpush1.bf16.msra.mxu0 0
    %707 = vmatprep.subr.bf16.mxu0 0
    %708 = vmatpush1.bf16.msra.mxu0 0
    %709 = vmatprep.subr.bf16.mxu0 0
    %710 = vmatpush1.bf16.msra.mxu0 0
    %711 = vmatprep.subr.bf16.mxu0 0
    %712 = vmatpush1.bf16.msra.mxu0 0
    %713 = vmatprep.subr.bf16.mxu0 0
    %714 = vmatpush1.bf16.msra.mxu0 0
    %715 = vmatprep.mubr.bf16.mxu0 0
    %716 = vmatmul.mubr.bf16.gmra.mrb[0].mxu0 %v614
    %v717 = vpop.f32.mrb[0].mxu0
    %v718 = vadd.f32 %v634, %v717
    %v719 = vpop.f32.mrb[0].mxu0
    %v720 = vpop.f32.mrb[0].mxu0
    %v721 = vpop.f32.mrb[0].mxu0
    %722 = vdwg.mxu0
    %vm723 = vcmask 9216
    %v724 = vsel %vm723, %v718, -inf
    %725 = vmax.xlane.f32.xlu0 %v724
    %v726 = vpop.xlane.xlu0 %725
    %v727 = vsub.f32 %v718, %v726
    %v728 = vmul.f32 %v727, 1.442695
    %v729 = vpow.pop %v728
    %v730 = vsel %vm723, %v729, 0.0
    %731 = vadd.xlane.f32.xlu0 %v730
    %v732 = vpop.xlane.xlu0 %731
    %v733 = vlog2.pop %v732
    %v734 = vmul.f32 %v733, 0.6931472
    %v735 = vsub.f32 %v727, %v734
    %736 = vst.msk [vmem:[#allocation2] sm:$0x3] %vm723, %v735
    // Predicated region
    $region38: #{gcnnet_forward.1} parent=1 // pred_check
      _
    $region39: #{gcnnet_forward.1} parent=1 // pred_check_branch
      %738 = sbr.rel (0) target = $region41
    $region40: #{gcnnet_forward.1} parent=1 // pred_region
      %s740 = ssub.s32 32, 32
      %741 = vsyncadd [#allocation3], %s740
      %s743 = sshll.u32 [#allocation2], 4
      %s744 = int_to_ptr.vmem [resolvable:$true] %s743
      %746 = dma.vmem_to_hbm [thread:$0]  %s744, 32, %s9, [#allocation3]
    $region41: #{gcnnet_forward.1} parent=1 // pred_fallthru
      _
    // Predicated region
    $region42: #{gcnnet_forward.1} parent=1 // pred_check
      _
    $region43: #{gcnnet_forward.1} parent=1 // pred_check_branch
      %748 = sbr.rel (0) target = $region45
    $region44: #{gcnnet_forward.1} parent=1 // pred_region
      %749 = dma.done [#allocation3], 32
    $region45: #{gcnnet_forward.1} parent=1 // pred_fallthru
      _
    %750 = vsyncpa [#allocation3], 1

</llo_original>
